<compile_context>
chip_gen: v6e
topology: v6e:2x2x1
jax: 0.10.0
libtpu: 0.0.40
codegen_flags: <defaults>
</compile_context>

<pallas_src>
import jax
import jax.numpy as jnp
from jax import lax
from jax.experimental import pallas as pl
from jax.experimental.pallas import tpu as pltpu


def _choose_tz(Z, Yp, Xp, cap=8, slab_bytes=4 << 20):
    """Largest divisor of Z such that one f32 slab stays under `slab_bytes` (and <= cap)."""
    per_plane = max(Yp * Xp * 4, 1)
    limit = int(max(1, min(Z, cap, slab_bytes // per_plane)))
    tz = 1
    for d in range(1, limit + 1):
        if Z % d == 0:
            tz = d
    return tz


def _make_grad_z_kernel(TZ, Y, X, Yp, Xp):
    """Kernel for one (TZ, Yp, Xp) z-slab; streams planes, accumulates a resident (Yp, Xp) block."""

    def kernel(slab_ref, halo0_ref, halo1_ref, out_ref):
        zi = pl.program_id(1)

        # Loop-invariant boundary masks, hoisted (JAX does not CSE broadcasts inside loops).
        row = lax.broadcasted_iota(jnp.int32, (Yp, Xp), 0)
        col = lax.broadcasted_iota(jnp.int32, (Yp, Xp), 1)
        my = row < (Y - 1)                       # rows owning a first y-difference
        mx = col < (X - 1)                       # cols owning a first x-difference
        zero = jnp.zeros((Yp, Xp), jnp.float32)

        def plane(i):
            # Static plane index into the extended slab [slab | halo0 | halo1].
            if i < TZ:
                return slab_ref[i].astype(jnp.float32)
            if i == TZ:
                return halo0_ref[0].astype(jnp.float32)
            return halo1_ref[0].astype(jnp.float32)

        # np.roll semantics: roll by (n-1) == roll by -1  => result[i] = a[i+1 (mod n)].
        def roll_y(a):
            return pltpu.roll(a, shift=Yp - 1, axis=0)

        def roll_x(a):
            return pltpu.roll(a, shift=Xp - 1, axis=1)

        def dfy(a):                              # zero-padded forward difference along y
            return jnp.where(my, roll_y(a) - a, zero)

        def dfx(a):                              # zero-padded forward difference along x
            return jnp.where(mx, roll_x(a) - a, zero)

        # Sliding 3-plane window along z; the clamped halos (edge replication) make the
        # padded first z-difference exactly zero for global z >= Z-1, like the reference.
        p0 = plane(0)
        p1 = plane(1)
        dz0 = p1 - p0                            # padded first z-diff of the current plane
        acc = zero
        for z in range(TZ):                      # TZ is small & static: fully unrolled
            p2 = plane(z + 2)
            dz1 = p2 - p1
            tzz = dz1 - dz0                      # d2/dz2 (padded)
            dy = dfy(p0)                         # first y-diff of the current plane
            dx = dfx(p0)                         # first x-diff of the current plane
            tyy = dfy(dy)                        # d2/dy2 (padded)
            txx = dfx(dx)                        # d2/dx2 (padded)
            txy = dfx(dy)                        # mixed d2/dydx
            tzy = dfy(dz0)                       # mixed d2/dzdy
            tzx = dfx(dz0)                       # mixed d2/dzdx
            acc = acc + (tzz * tzz + tyy * tyy + txx * txx
                         + 2.0 * (txy * txy + tzy * tzy + tzx * tzx))
            p0, p1, dz0 = p1, p2, dz1

        # One full-width, unmasked write per grid step.
        @pl.when(zi == 0)
        def _first():
            out_ref[...] = acc

        @pl.when(zi != 0)
        def _rest():
            out_ref[...] += acc

    return kernel


def grad_z(pred, *, tz_cap=8):
    """Pallas implementation of Grad_z.forward(pred); pred is (N, C, D0, D1, D2)."""
    N, C = pred.shape[0], pred.shape[1]
    spatial = pred.shape[2:]
    assert len(spatial) == 3, "Grad_z expects a 5D (N, C, D0, D1, D2) input"

    # Penalty is symmetric in the three spatial axes: largest extent -> lanes,
    # next largest -> sublanes (lane-dense layout), smallest -> the streamed z axis.
    order = tuple(sorted(range(3), key=lambda i: spatial[i]))
    if order != (0, 1, 2):
        pred = jnp.transpose(pred, (0, 1) + tuple(a + 2 for a in order))
    Z, Y, X = (spatial[a] for a in order)

    NC = N * C
    flat = pred.reshape(NC, Z, Y, X)             # native dtype; f32 cast happens in-kernel

    # Zero-pad to (8, 128)-aligned planes: unmasked stores, aligned rolls; the in-kernel
    # y/x boundary masks keep every padded-region contribution exactly zero.
    Yp = ((Y + 7) // 8) * 8
    Xp = ((X + 127) // 128) * 128
    if (Yp, Xp) != (Y, X):
        flat = jnp.pad(flat, ((0, 0), (0, 0), (0, Yp - Y), (0, Xp - X)))

    TZ = _choose_tz(Z, Yp, Xp, cap=tz_cap)
    n_slab = Z // TZ
    kernel = _make_grad_z_kernel(TZ, Y, X, Yp, Xp)

    def slab_map(nc, zi):
        return (nc, zi, 0, 0)

    def halo_map(offset):
        def index_map(nc, zi):
            # Clamp to the last real plane: edge replication for the z halo (load-bearing).
            return (nc, jnp.minimum((zi + 1) * TZ + offset, Z - 1), 0, 0)
        return index_map

    cost = pl.CostEstimate(
        flops=int(28 * NC * Z * Yp * Xp),
        transcendentals=0,
        bytes_accessed=int(flat.size * flat.dtype.itemsize + NC * Yp * Xp * 4),
    )

    per_yx = pl.pallas_call(
        kernel,
        out_shape=jax.ShapeDtypeStruct((NC, Yp, Xp), jnp.float32),
        grid=(NC, n_slab),
        in_specs=[
            pl.BlockSpec((None, TZ, Yp, Xp), slab_map),
            pl.BlockSpec((None, 1, Yp, Xp), halo_map(0)),
            pl.BlockSpec((None, 1, Yp, Xp), halo_map(1)),
        ],
        out_specs=pl.BlockSpec((None, Yp, Xp), lambda nc, zi: (nc, 0, 0)),
        compiler_params=pltpu.CompilerParams(
            dimension_semantics=("parallel", "arbitrary"),
            vmem_limit_bytes=32 * 1024 * 1024,
        ),
        cost_estimate=cost,
    )(flat, flat, flat)

    denom = jnp.float32(NC * Z * Y * X)          # every torch .mean() divides by the full count
    return jnp.sum(per_yx, dtype=jnp.float32) / denom


# ---------------- pure-JAX reference (mirrors the PyTorch module exactly) ----------------
def _diffs_ref(y, dim):
    axis = dim + 2
    n = y.shape[axis]
    valid = lax.slice_in_dim(y, 1, n, axis=axis) - lax.slice_in_dim(y, 0, n - 1, axis=axis)
    pad_cfg = [(0, 0, 0)] * y.ndim
    pad_cfg[axis] = (0, 1, 0)
    return lax.pad(valid, jnp.zeros((), y.dtype), pad_cfg)


def grad_z_ref(pred):
    pred = pred.astype(jnp.float32)
    Ty = _diffs_ref(pred, 0)
    Tx = _diffs_ref(pred, 1)
    Tz = _diffs_ref(pred, 2)
    Tyy = _diffs_ref(Ty, 0)
    Txx = _diffs_ref(Tx, 1)
    Tzz = _diffs_ref(Tz, 2)
    Txy = _diffs_ref(Tx, 0)
    Txz = _diffs_ref(Tx, 2)
    Tyz = _diffs_ref(Ty, 2)
    return (
        jnp.mean(Tyy ** 2)
        + jnp.mean(Txx ** 2)
        + jnp.mean(Tzz ** 2)
        + 2 * jnp.mean(Txy ** 2)
        + 2 * jnp.mean(Txz ** 2)
        + 2 * jnp.mean(Tyz ** 2)
    )


if __name__ == "__main__":
    key = jax.random.PRNGKey(0)
    k1, k2, k3 = jax.random.split(key, 3)

    # (N, C, Z, Y, X) -- small 3D displacement field (C = 3 components); single z-slab path.
    pred = jax.random.normal(k1, (2, 3, 8, 8, 16), dtype=jnp.float32)
    out = jax.block_until_ready(grad_z(pred))
    ref = grad_z_ref(pred)
    assert jnp.allclose(out, ref, rtol=1e-5, atol=1e-5), (float(out), float(ref))

    # Odd, unaligned extents + spatial permutation + many 1-deep slabs (stresses the z halo).
    pred2 = jax.random.normal(k2, (1, 2, 9, 7, 5), dtype=jnp.float32)
    out2 = jax.block_until_ready(grad_z(pred2, tz_cap=2))
    ref2 = grad_z_ref(pred2)
    assert jnp.allclose(out2, ref2, rtol=1e-5, atol=1e-5), (float(out2), float(ref2))

    # Multi-slab path with TZ > 1 (real halo planes on the first slab, replicated on the last).
    pred3 = jax.random.normal(k3, (1, 1, 12, 8, 16), dtype=jnp.float32)
    out3 = jax.block_until_ready(grad_z(pred3, tz_cap=4))
    ref3 = grad_z_ref(pred3)
    assert jnp.allclose(out3, ref3, rtol=1e-5, atol=1e-5), (float(out3), float(ref3))

    print("KERNEL_OK")
</pallas_src>

<mosaic_0001>
module attributes {stable_mosaic.version = 11 : i64} {
  func.func @kernel(%arg0: i32, %arg1: i32, %arg2: memref<1x8x8x128xf32, #tpu.memory_space<vmem>>, %arg3: memref<1x1x8x128xf32, #tpu.memory_space<vmem>>, %arg4: memref<1x1x8x128xf32, #tpu.memory_space<vmem>>, %arg5: memref<1x8x128xf32, #tpu.memory_space<vmem>>) attributes {dimension_semantics = [#tpu.dimension_semantics<parallel>, #tpu.dimension_semantics<arbitrary>], iteration_bounds = array<i64: 6, 1>, scalar_prefetch = 0 : i64, scratch_operands = 0 : i64, tpu.core_type = #tpu.core_type<tc>, window_params = [{transform_indices = @transform_0, window_bounds = array<i64: 1, 8, 8, 128>}, {transform_indices = @transform_1, window_bounds = array<i64: 1, 1, 8, 128>}, {transform_indices = @transform_2, window_bounds = array<i64: 1, 1, 8, 128>}, {transform_indices = @transform_3, window_bounds = array<i64: 1, 8, 128>}]} {
    %0 = tpu.iota {dimensions = array<i32: 0>} : vector<8x128xi32>
    %1 = tpu.iota {dimensions = array<i32: 1>} : vector<8x128xi32>
    %c7_i32 = arith.constant 7 : i32
    %2 = vector.broadcast %c7_i32 : i32 to vector<8x128xi32>
    %3 = arith.cmpi slt, %0, %2 : vector<8x128xi32>
    %c15_i32 = arith.constant 15 : i32
    %4 = vector.broadcast %c15_i32 : i32 to vector<8x128xi32>
    %5 = arith.cmpi slt, %1, %4 : vector<8x128xi32>
    %cst = arith.constant 0.000000e+00 : f32
    %6 = vector.broadcast %cst : f32 to vector<8x128xf32>
    %c0 = arith.constant 0 : index
    %c0_0 = arith.constant 0 : index
    %c0_1 = arith.constant 0 : index
    %c0_2 = arith.constant 0 : index
    %7 = vector.load %arg2[%c0, %c0_0, %c0_1, %c0_2] : memref<1x8x8x128xf32, #tpu.memory_space<vmem>>, vector<1x1x8x128xf32>
    %8 = vector.shape_cast %7 : vector<1x1x8x128xf32> to vector<8x128xf32>
    %c0_3 = arith.constant 0 : index
    %c1 = arith.constant 1 : index
    %c0_4 = arith.constant 0 : index
    %c0_5 = arith.constant 0 : index
    %9 = vector.load %arg2[%c0_3, %c1, %c0_4, %c0_5] : memref<1x8x8x128xf32, #tpu.memory_space<vmem>>, vector<1x1x8x128xf32>
    %10 = vector.shape_cast %9 : vector<1x1x8x128xf32> to vector<8x128xf32>
    %11 = arith.subf %10, %8 : vector<8x128xf32>
    %c0_6 = arith.constant 0 : index
    %c2 = arith.constant 2 : index
    %c0_7 = arith.constant 0 : index
    %c0_8 = arith.constant 0 : index
    %12 = vector.load %arg2[%c0_6, %c2, %c0_7, %c0_8] : memref<1x8x8x128xf32, #tpu.memory_space<vmem>>, vector<1x1x8x128xf32>
    %13 = vector.shape_cast %12 : vector<1x1x8x128xf32> to vector<8x128xf32>
    %14 = arith.subf %13, %10 : vector<8x128xf32>
    %15 = arith.subf %14, %11 : vector<8x128xf32>
    %c7_i32_9 = arith.constant 7 : i32
    %16 = tpu.dynamic_rotate %8 by %c7_i32_9 dim 0 : vector<8x128xf32>, i32 -> vector<8x128xf32>
    %17 = arith.subf %16, %8 : vector<8x128xf32>
    %18 = arith.select %3, %17, %6 : vector<8x128xi1>, vector<8x128xf32>
    %c127_i32 = arith.constant 127 : i32
    %19 = tpu.dynamic_rotate %8 by %c127_i32 dim 1 : vector<8x128xf32>, i32 -> vector<8x128xf32>
    %20 = arith.subf %19, %8 : vector<8x128xf32>
    %21 = arith.select %5, %20, %6 : vector<8x128xi1>, vector<8x128xf32>
    %c7_i32_10 = arith.constant 7 : i32
    %22 = tpu.dynamic_rotate %18 by %c7_i32_10 dim 0 : vector<8x128xf32>, i32 -> vector<8x128xf32>
    %23 = arith.subf %22, %18 : vector<8x128xf32>
    %24 = arith.select %3, %23, %6 : vector<8x128xi1>, vector<8x128xf32>
    %c127_i32_11 = arith.constant 127 : i32
    %25 = tpu.dynamic_rotate %21 by %c127_i32_11 dim 1 : vector<8x128xf32>, i32 -> vector<8x128xf32>
    %26 = arith.subf %25, %21 : vector<8x128xf32>
    %27 = arith.select %5, %26, %6 : vector<8x128xi1>, vector<8x128xf32>
    %c127_i32_12 = arith.constant 127 : i32
    %28 = tpu.dynamic_rotate %18 by %c127_i32_12 dim 1 : vector<8x128xf32>, i32 -> vector<8x128xf32>
    %29 = arith.subf %28, %18 : vector<8x128xf32>
    %30 = arith.select %5, %29, %6 : vector<8x128xi1>, vector<8x128xf32>
    %c7_i32_13 = arith.constant 7 : i32
    %31 = tpu.dynamic_rotate %11 by %c7_i32_13 dim 0 : vector<8x128xf32>, i32 -> vector<8x128xf32>
    %32 = arith.subf %31, %11 : vector<8x128xf32>
    %33 = arith.select %3, %32, %6 : vector<8x128xi1>, vector<8x128xf32>
    %c127_i32_14 = arith.constant 127 : i32
    %34 = tpu.dynamic_rotate %11 by %c127_i32_14 dim 1 : vector<8x128xf32>, i32 -> vector<8x128xf32>
    %35 = arith.subf %34, %11 : vector<8x128xf32>
    %36 = arith.select %5, %35, %6 : vector<8x128xi1>, vector<8x128xf32>
    %37 = arith.mulf %15, %15 : vector<8x128xf32>
    %38 = arith.mulf %24, %24 : vector<8x128xf32>
    %39 = arith.addf %37, %38 : vector<8x128xf32>
    %40 = arith.mulf %27, %27 : vector<8x128xf32>
    %41 = arith.addf %39, %40 : vector<8x128xf32>
    %42 = arith.mulf %30, %30 : vector<8x128xf32>
    %43 = arith.mulf %33, %33 : vector<8x128xf32>
    %44 = arith.addf %42, %43 : vector<8x128xf32>
    %45 = arith.mulf %36, %36 : vector<8x128xf32>
    %46 = arith.addf %44, %45 : vector<8x128xf32>
    %cst_15 = arith.constant 2.000000e+00 : f32
    %47 = vector.broadcast %cst_15 : f32 to vector<8x128xf32>
    %48 = arith.mulf %47, %46 : vector<8x128xf32>
    %49 = arith.addf %41, %48 : vector<8x128xf32>
    %50 = arith.addf %6, %49 : vector<8x128xf32>
    %c0_16 = arith.constant 0 : index
    %c3 = arith.constant 3 : index
    %c0_17 = arith.constant 0 : index
    %c0_18 = arith.constant 0 : index
    %51 = vector.load %arg2[%c0_16, %c3, %c0_17, %c0_18] : memref<1x8x8x128xf32, #tpu.memory_space<vmem>>, vector<1x1x8x128xf32>
    %52 = vector.shape_cast %51 : vector<1x1x8x128xf32> to vector<8x128xf32>
    %53 = arith.subf %52, %13 : vector<8x128xf32>
    %54 = arith.subf %53, %14 : vector<8x128xf32>
    %c7_i32_19 = arith.constant 7 : i32
    %55 = tpu.dynamic_rotate %10 by %c7_i32_19 dim 0 : vector<8x128xf32>, i32 -> vector<8x128xf32>
    %56 = arith.subf %55, %10 : vector<8x128xf32>
    %57 = arith.select %3, %56, %6 : vector<8x128xi1>, vector<8x128xf32>
    %c127_i32_20 = arith.constant 127 : i32
    %58 = tpu.dynamic_rotate %10 by %c127_i32_20 dim 1 : vector<8x128xf32>, i32 -> vector<8x128xf32>
    %59 = arith.subf %58, %10 : vector<8x128xf32>
    %60 = arith.select %5, %59, %6 : vector<8x128xi1>, vector<8x128xf32>
    %c7_i32_21 = arith.constant 7 : i32
    %61 = tpu.dynamic_rotate %57 by %c7_i32_21 dim 0 : vector<8x128xf32>, i32 -> vector<8x128xf32>
    %62 = arith.subf %61, %57 : vector<8x128xf32>
    %63 = arith.select %3, %62, %6 : vector<8x128xi1>, vector<8x128xf32>
    %c127_i32_22 = arith.constant 127 : i32
    %64 = tpu.dynamic_rotate %60 by %c127_i32_22 dim 1 : vector<8x128xf32>, i32 -> vector<8x128xf32>
    %65 = arith.subf %64, %60 : vector<8x128xf32>
    %66 = arith.select %5, %65, %6 : vector<8x128xi1>, vector<8x128xf32>
    %c127_i32_23 = arith.constant 127 : i32
    %67 = tpu.dynamic_rotate %57 by %c127_i32_23 dim 1 : vector<8x128xf32>, i32 -> vector<8x128xf32>
    %68 = arith.subf %67, %57 : vector<8x128xf32>
    %69 = arith.select %5, %68, %6 : vector<8x128xi1>, vector<8x128xf32>
    %c7_i32_24 = arith.constant 7 : i32
    %70 = tpu.dynamic_rotate %14 by %c7_i32_24 dim 0 : vector<8x128xf32>, i32 -> vector<8x128xf32>
    %71 = arith.subf %70, %14 : vector<8x128xf32>
    %72 = arith.select %3, %71, %6 : vector<8x128xi1>, vector<8x128xf32>
    %c127_i32_25 = arith.constant 127 : i32
    %73 = tpu.dynamic_rotate %14 by %c127_i32_25 dim 1 : vector<8x128xf32>, i32 -> vector<8x128xf32>
    %74 = arith.subf %73, %14 : vector<8x128xf32>
    %75 = arith.select %5, %74, %6 : vector<8x128xi1>, vector<8x128xf32>
    %76 = arith.mulf %54, %54 : vector<8x128xf32>
    %77 = arith.mulf %63, %63 : vector<8x128xf32>
    %78 = arith.addf %76, %77 : vector<8x128xf32>
    %79 = arith.mulf %66, %66 : vector<8x128xf32>
    %80 = arith.addf %78, %79 : vector<8x128xf32>
    %81 = arith.mulf %69, %69 : vector<8x128xf32>
    %82 = arith.mulf %72, %72 : vector<8x128xf32>
    %83 = arith.addf %81, %82 : vector<8x128xf32>
    %84 = arith.mulf %75, %75 : vector<8x128xf32>
    %85 = arith.addf %83, %84 : vector<8x128xf32>
    %cst_26 = arith.constant 2.000000e+00 : f32
    %86 = vector.broadcast %cst_26 : f32 to vector<8x128xf32>
    %87 = arith.mulf %86, %85 : vector<8x128xf32>
    %88 = arith.addf %80, %87 : vector<8x128xf32>
    %89 = arith.addf %50, %88 : vector<8x128xf32>
    %c0_27 = arith.constant 0 : index
    %c4 = arith.constant 4 : index
    %c0_28 = arith.constant 0 : index
    %c0_29 = arith.constant 0 : index
    %90 = vector.load %arg2[%c0_27, %c4, %c0_28, %c0_29] : memref<1x8x8x128xf32, #tpu.memory_space<vmem>>, vector<1x1x8x128xf32>
    %91 = vector.shape_cast %90 : vector<1x1x8x128xf32> to vector<8x128xf32>
    %92 = arith.subf %91, %52 : vector<8x128xf32>
    %93 = arith.subf %92, %53 : vector<8x128xf32>
    %c7_i32_30 = arith.constant 7 : i32
    %94 = tpu.dynamic_rotate %13 by %c7_i32_30 dim 0 : vector<8x128xf32>, i32 -> vector<8x128xf32>
    %95 = arith.subf %94, %13 : vector<8x128xf32>
    %96 = arith.select %3, %95, %6 : vector<8x128xi1>, vector<8x128xf32>
    %c127_i32_31 = arith.constant 127 : i32
    %97 = tpu.dynamic_rotate %13 by %c127_i32_31 dim 1 : vector<8x128xf32>, i32 -> vector<8x128xf32>
    %98 = arith.subf %97, %13 : vector<8x128xf32>
    %99 = arith.select %5, %98, %6 : vector<8x128xi1>, vector<8x128xf32>
    %c7_i32_32 = arith.constant 7 : i32
    %100 = tpu.dynamic_rotate %96 by %c7_i32_32 dim 0 : vector<8x128xf32>, i32 -> vector<8x128xf32>
    %101 = arith.subf %100, %96 : vector<8x128xf32>
    %102 = arith.select %3, %101, %6 : vector<8x128xi1>, vector<8x128xf32>
    %c127_i32_33 = arith.constant 127 : i32
    %103 = tpu.dynamic_rotate %99 by %c127_i32_33 dim 1 : vector<8x128xf32>, i32 -> vector<8x128xf32>
    %104 = arith.subf %103, %99 : vector<8x128xf32>
    %105 = arith.select %5, %104, %6 : vector<8x128xi1>, vector<8x128xf32>
    %c127_i32_34 = arith.constant 127 : i32
    %106 = tpu.dynamic_rotate %96 by %c127_i32_34 dim 1 : vector<8x128xf32>, i32 -> vector<8x128xf32>
    %107 = arith.subf %106, %96 : vector<8x128xf32>
    %108 = arith.select %5, %107, %6 : vector<8x128xi1>, vector<8x128xf32>
    %c7_i32_35 = arith.constant 7 : i32
    %109 = tpu.dynamic_rotate %53 by %c7_i32_35 dim 0 : vector<8x128xf32>, i32 -> vector<8x128xf32>
    %110 = arith.subf %109, %53 : vector<8x128xf32>
    %111 = arith.select %3, %110, %6 : vector<8x128xi1>, vector<8x128xf32>
    %c127_i32_36 = arith.constant 127 : i32
    %112 = tpu.dynamic_rotate %53 by %c127_i32_36 dim 1 : vector<8x128xf32>, i32 -> vector<8x128xf32>
    %113 = arith.subf %112, %53 : vector<8x128xf32>
    %114 = arith.select %5, %113, %6 : vector<8x128xi1>, vector<8x128xf32>
    %115 = arith.mulf %93, %93 : vector<8x128xf32>
    %116 = arith.mulf %102, %102 : vector<8x128xf32>
    %117 = arith.addf %115, %116 : vector<8x128xf32>
    %118 = arith.mulf %105, %105 : vector<8x128xf32>
    %119 = arith.addf %117, %118 : vector<8x128xf32>
    %120 = arith.mulf %108, %108 : vector<8x128xf32>
    %121 = arith.mulf %111, %111 : vector<8x128xf32>
    %122 = arith.addf %120, %121 : vector<8x128xf32>
    %123 = arith.mulf %114, %114 : vector<8x128xf32>
    %124 = arith.addf %122, %123 : vector<8x128xf32>
    %cst_37 = arith.constant 2.000000e+00 : f32
    %125 = vector.broadcast %cst_37 : f32 to vector<8x128xf32>
    %126 = arith.mulf %125, %124 : vector<8x128xf32>
    %127 = arith.addf %119, %126 : vector<8x128xf32>
    %128 = arith.addf %89, %127 : vector<8x128xf32>
    %c0_38 = arith.constant 0 : index
    %c5 = arith.constant 5 : index
    %c0_39 = arith.constant 0 : index
    %c0_40 = arith.constant 0 : index
    %129 = vector.load %arg2[%c0_38, %c5, %c0_39, %c0_40] : memref<1x8x8x128xf32, #tpu.memory_space<vmem>>, vector<1x1x8x128xf32>
    %130 = vector.shape_cast %129 : vector<1x1x8x128xf32> to vector<8x128xf32>
    %131 = arith.subf %130, %91 : vector<8x128xf32>
    %132 = arith.subf %131, %92 : vector<8x128xf32>
    %c7_i32_41 = arith.constant 7 : i32
    %133 = tpu.dynamic_rotate %52 by %c7_i32_41 dim 0 : vector<8x128xf32>, i32 -> vector<8x128xf32>
    %134 = arith.subf %133, %52 : vector<8x128xf32>
    %135 = arith.select %3, %134, %6 : vector<8x128xi1>, vector<8x128xf32>
    %c127_i32_42 = arith.constant 127 : i32
    %136 = tpu.dynamic_rotate %52 by %c127_i32_42 dim 1 : vector<8x128xf32>, i32 -> vector<8x128xf32>
    %137 = arith.subf %136, %52 : vector<8x128xf32>
    %138 = arith.select %5, %137, %6 : vector<8x128xi1>, vector<8x128xf32>
    %c7_i32_43 = arith.constant 7 : i32
    %139 = tpu.dynamic_rotate %135 by %c7_i32_43 dim 0 : vector<8x128xf32>, i32 -> vector<8x128xf32>
    %140 = arith.subf %139, %135 : vector<8x128xf32>
    %141 = arith.select %3, %140, %6 : vector<8x128xi1>, vector<8x128xf32>
    %c127_i32_44 = arith.constant 127 : i32
    %142 = tpu.dynamic_rotate %138 by %c127_i32_44 dim 1 : vector<8x128xf32>, i32 -> vector<8x128xf32>
    %143 = arith.subf %142, %138 : vector<8x128xf32>
    %144 = arith.select %5, %143, %6 : vector<8x128xi1>, vector<8x128xf32>
    %c127_i32_45 = arith.constant 127 : i32
    %145 = tpu.dynamic_rotate %135 by %c127_i32_45 dim 1 : vector<8x128xf32>, i32 -> vector<8x128xf32>
    %146 = arith.subf %145, %135 : vector<8x128xf32>
    %147 = arith.select %5, %146, %6 : vector<8x128xi1>, vector<8x128xf32>
    %c7_i32_46 = arith.constant 7 : i32
    %148 = tpu.dynamic_rotate %92 by %c7_i32_46 dim 0 : vector<8x128xf32>, i32 -> vector<8x128xf32>
    %149 = arith.subf %148, %92 : vector<8x128xf32>
    %150 = arith.select %3, %149, %6 : vector<8x128xi1>, vector<8x128xf32>
    %c127_i32_47 = arith.constant 127 : i32
    %151 = tpu.dynamic_rotate %92 by %c127_i32_47 dim 1 : vector<8x128xf32>, i32 -> vector<8x128xf32>
    %152 = arith.subf %151, %92 : vector<8x128xf32>
    %153 = arith.select %5, %152, %6 : vector<8x128xi1>, vector<8x128xf32>
    %154 = arith.mulf %132, %132 : vector<8x128xf32>
    %155 = arith.mulf %141, %141 : vector<8x128xf32>
    %156 = arith.addf %154, %155 : vector<8x128xf32>
    %157 = arith.mulf %144, %144 : vector<8x128xf32>
    %158 = arith.addf %156, %157 : vector<8x128xf32>
    %159 = arith.mulf %147, %147 : vector<8x128xf32>
    %160 = arith.mulf %150, %150 : vector<8x128xf32>
    %161 = arith.addf %159, %160 : vector<8x128xf32>
    %162 = arith.mulf %153, %153 : vector<8x128xf32>
    %163 = arith.addf %161, %162 : vector<8x128xf32>
    %cst_48 = arith.constant 2.000000e+00 : f32
    %164 = vector.broadcast %cst_48 : f32 to vector<8x128xf32>
    %165 = arith.mulf %164, %163 : vector<8x128xf32>
    %166 = arith.addf %158, %165 : vector<8x128xf32>
    %167 = arith.addf %128, %166 : vector<8x128xf32>
    %c0_49 = arith.constant 0 : index
    %c6 = arith.constant 6 : index
    %c0_50 = arith.constant 0 : index
    %c0_51 = arith.constant 0 : index
    %168 = vector.load %arg2[%c0_49, %c6, %c0_50, %c0_51] : memref<1x8x8x128xf32, #tpu.memory_space<vmem>>, vector<1x1x8x128xf32>
    %169 = vector.shape_cast %168 : vector<1x1x8x128xf32> to vector<8x128xf32>
    %170 = arith.subf %169, %130 : vector<8x128xf32>
    %171 = arith.subf %170, %131 : vector<8x128xf32>
    %c7_i32_52 = arith.constant 7 : i32
    %172 = tpu.dynamic_rotate %91 by %c7_i32_52 dim 0 : vector<8x128xf32>, i32 -> vector<8x128xf32>
    %173 = arith.subf %172, %91 : vector<8x128xf32>
    %174 = arith.select %3, %173, %6 : vector<8x128xi1>, vector<8x128xf32>
    %c127_i32_53 = arith.constant 127 : i32
    %175 = tpu.dynamic_rotate %91 by %c127_i32_53 dim 1 : vector<8x128xf32>, i32 -> vector<8x128xf32>
    %176 = arith.subf %175, %91 : vector<8x128xf32>
    %177 = arith.select %5, %176, %6 : vector<8x128xi1>, vector<8x128xf32>
    %c7_i32_54 = arith.constant 7 : i32
    %178 = tpu.dynamic_rotate %174 by %c7_i32_54 dim 0 : vector<8x128xf32>, i32 -> vector<8x128xf32>
    %179 = arith.subf %178, %174 : vector<8x128xf32>
    %180 = arith.select %3, %179, %6 : vector<8x128xi1>, vector<8x128xf32>
    %c127_i32_55 = arith.constant 127 : i32
    %181 = tpu.dynamic_rotate %177 by %c127_i32_55 dim 1 : vector<8x128xf32>, i32 -> vector<8x128xf32>
    %182 = arith.subf %181, %177 : vector<8x128xf32>
    %183 = arith.select %5, %182, %6 : vector<8x128xi1>, vector<8x128xf32>
    %c127_i32_56 = arith.constant 127 : i32
    %184 = tpu.dynamic_rotate %174 by %c127_i32_56 dim 1 : vector<8x128xf32>, i32 -> vector<8x128xf32>
    %185 = arith.subf %184, %174 : vector<8x128xf32>
    %186 = arith.select %5, %185, %6 : vector<8x128xi1>, vector<8x128xf32>
    %c7_i32_57 = arith.constant 7 : i32
    %187 = tpu.dynamic_rotate %131 by %c7_i32_57 dim 0 : vector<8x128xf32>, i32 -> vector<8x128xf32>
    %188 = arith.subf %187, %131 : vector<8x128xf32>
    %189 = arith.select %3, %188, %6 : vector<8x128xi1>, vector<8x128xf32>
    %c127_i32_58 = arith.constant 127 : i32
    %190 = tpu.dynamic_rotate %131 by %c127_i32_58 dim 1 : vector<8x128xf32>, i32 -> vector<8x128xf32>
    %191 = arith.subf %190, %131 : vector<8x128xf32>
    %192 = arith.select %5, %191, %6 : vector<8x128xi1>, vector<8x128xf32>
    %193 = arith.mulf %171, %171 : vector<8x128xf32>
    %194 = arith.mulf %180, %180 : vector<8x128xf32>
    %195 = arith.addf %193, %194 : vector<8x128xf32>
    %196 = arith.mulf %183, %183 : vector<8x128xf32>
    %197 = arith.addf %195, %196 : vector<8x128xf32>
    %198 = arith.mulf %186, %186 : vector<8x128xf32>
    %199 = arith.mulf %189, %189 : vector<8x128xf32>
    %200 = arith.addf %198, %199 : vector<8x128xf32>
    %201 = arith.mulf %192, %192 : vector<8x128xf32>
    %202 = arith.addf %200, %201 : vector<8x128xf32>
    %cst_59 = arith.constant 2.000000e+00 : f32
    %203 = vector.broadcast %cst_59 : f32 to vector<8x128xf32>
    %204 = arith.mulf %203, %202 : vector<8x128xf32>
    %205 = arith.addf %197, %204 : vector<8x128xf32>
    %206 = arith.addf %167, %205 : vector<8x128xf32>
    %c0_60 = arith.constant 0 : index
    %c7 = arith.constant 7 : index
    %c0_61 = arith.constant 0 : index
    %c0_62 = arith.constant 0 : index
    %207 = vector.load %arg2[%c0_60, %c7, %c0_61, %c0_62] : memref<1x8x8x128xf32, #tpu.memory_space<vmem>>, vector<1x1x8x128xf32>
    %208 = vector.shape_cast %207 : vector<1x1x8x128xf32> to vector<8x128xf32>
    %209 = arith.subf %208, %169 : vector<8x128xf32>
    %210 = arith.subf %209, %170 : vector<8x128xf32>
    %c7_i32_63 = arith.constant 7 : i32
    %211 = tpu.dynamic_rotate %130 by %c7_i32_63 dim 0 : vector<8x128xf32>, i32 -> vector<8x128xf32>
    %212 = arith.subf %211, %130 : vector<8x128xf32>
    %213 = arith.select %3, %212, %6 : vector<8x128xi1>, vector<8x128xf32>
    %c127_i32_64 = arith.constant 127 : i32
    %214 = tpu.dynamic_rotate %130 by %c127_i32_64 dim 1 : vector<8x128xf32>, i32 -> vector<8x128xf32>
    %215 = arith.subf %214, %130 : vector<8x128xf32>
    %216 = arith.select %5, %215, %6 : vector<8x128xi1>, vector<8x128xf32>
    %c7_i32_65 = arith.constant 7 : i32
    %217 = tpu.dynamic_rotate %213 by %c7_i32_65 dim 0 : vector<8x128xf32>, i32 -> vector<8x128xf32>
    %218 = arith.subf %217, %213 : vector<8x128xf32>
    %219 = arith.select %3, %218, %6 : vector<8x128xi1>, vector<8x128xf32>
    %c127_i32_66 = arith.constant 127 : i32
    %220 = tpu.dynamic_rotate %216 by %c127_i32_66 dim 1 : vector<8x128xf32>, i32 -> vector<8x128xf32>
    %221 = arith.subf %220, %216 : vector<8x128xf32>
    %222 = arith.select %5, %221, %6 : vector<8x128xi1>, vector<8x128xf32>
    %c127_i32_67 = arith.constant 127 : i32
    %223 = tpu.dynamic_rotate %213 by %c127_i32_67 dim 1 : vector<8x128xf32>, i32 -> vector<8x128xf32>
    %224 = arith.subf %223, %213 : vector<8x128xf32>
    %225 = arith.select %5, %224, %6 : vector<8x128xi1>, vector<8x128xf32>
    %c7_i32_68 = arith.constant 7 : i32
    %226 = tpu.dynamic_rotate %170 by %c7_i32_68 dim 0 : vector<8x128xf32>, i32 -> vector<8x128xf32>
    %227 = arith.subf %226, %170 : vector<8x128xf32>
    %228 = arith.select %3, %227, %6 : vector<8x128xi1>, vector<8x128xf32>
    %c127_i32_69 = arith.constant 127 : i32
    %229 = tpu.dynamic_rotate %170 by %c127_i32_69 dim 1 : vector<8x128xf32>, i32 -> vector<8x128xf32>
    %230 = arith.subf %229, %170 : vector<8x128xf32>
    %231 = arith.select %5, %230, %6 : vector<8x128xi1>, vector<8x128xf32>
    %232 = arith.mulf %210, %210 : vector<8x128xf32>
    %233 = arith.mulf %219, %219 : vector<8x128xf32>
    %234 = arith.addf %232, %233 : vector<8x128xf32>
    %235 = arith.mulf %222, %222 : vector<8x128xf32>
    %236 = arith.addf %234, %235 : vector<8x128xf32>
    %237 = arith.mulf %225, %225 : vector<8x128xf32>
    %238 = arith.mulf %228, %228 : vector<8x128xf32>
    %239 = arith.addf %237, %238 : vector<8x128xf32>
    %240 = arith.mulf %231, %231 : vector<8x128xf32>
    %241 = arith.addf %239, %240 : vector<8x128xf32>
    %cst_70 = arith.constant 2.000000e+00 : f32
    %242 = vector.broadcast %cst_70 : f32 to vector<8x128xf32>
    %243 = arith.mulf %242, %241 : vector<8x128xf32>
    %244 = arith.addf %236, %243 : vector<8x128xf32>
    %245 = arith.addf %206, %244 : vector<8x128xf32>
    %c0_71 = arith.constant 0 : index
    %c0_72 = arith.constant 0 : index
    %c0_73 = arith.constant 0 : index
    %c0_74 = arith.constant 0 : index
    %246 = vector.load %arg3[%c0_71, %c0_72, %c0_73, %c0_74] : memref<1x1x8x128xf32, #tpu.memory_space<vmem>>, vector<1x1x8x128xf32>
    %247 = vector.shape_cast %246 : vector<1x1x8x128xf32> to vector<8x128xf32>
    %248 = arith.subf %247, %208 : vector<8x128xf32>
    %249 = arith.subf %248, %209 : vector<8x128xf32>
    %c7_i32_75 = arith.constant 7 : i32
    %250 = tpu.dynamic_rotate %169 by %c7_i32_75 dim 0 : vector<8x128xf32>, i32 -> vector<8x128xf32>
    %251 = arith.subf %250, %169 : vector<8x128xf32>
    %252 = arith.select %3, %251, %6 : vector<8x128xi1>, vector<8x128xf32>
    %c127_i32_76 = arith.constant 127 : i32
    %253 = tpu.dynamic_rotate %169 by %c127_i32_76 dim 1 : vector<8x128xf32>, i32 -> vector<8x128xf32>
    %254 = arith.subf %253, %169 : vector<8x128xf32>
    %255 = arith.select %5, %254, %6 : vector<8x128xi1>, vector<8x128xf32>
    %c7_i32_77 = arith.constant 7 : i32
    %256 = tpu.dynamic_rotate %252 by %c7_i32_77 dim 0 : vector<8x128xf32>, i32 -> vector<8x128xf32>
    %257 = arith.subf %256, %252 : vector<8x128xf32>
    %258 = arith.select %3, %257, %6 : vector<8x128xi1>, vector<8x128xf32>
    %c127_i32_78 = arith.constant 127 : i32
    %259 = tpu.dynamic_rotate %255 by %c127_i32_78 dim 1 : vector<8x128xf32>, i32 -> vector<8x128xf32>
    %260 = arith.subf %259, %255 : vector<8x128xf32>
    %261 = arith.select %5, %260, %6 : vector<8x128xi1>, vector<8x128xf32>
    %c127_i32_79 = arith.constant 127 : i32
    %262 = tpu.dynamic_rotate %252 by %c127_i32_79 dim 1 : vector<8x128xf32>, i32 -> vector<8x128xf32>
    %263 = arith.subf %262, %252 : vector<8x128xf32>
    %264 = arith.select %5, %263, %6 : vector<8x128xi1>, vector<8x128xf32>
    %c7_i32_80 = arith.constant 7 : i32
    %265 = tpu.dynamic_rotate %209 by %c7_i32_80 dim 0 : vector<8x128xf32>, i32 -> vector<8x128xf32>
    %266 = arith.subf %265, %209 : vector<8x128xf32>
    %267 = arith.select %3, %266, %6 : vector<8x128xi1>, vector<8x128xf32>
    %c127_i32_81 = arith.constant 127 : i32
    %268 = tpu.dynamic_rotate %209 by %c127_i32_81 dim 1 : vector<8x128xf32>, i32 -> vector<8x128xf32>
    %269 = arith.subf %268, %209 : vector<8x128xf32>
    %270 = arith.select %5, %269, %6 : vector<8x128xi1>, vector<8x128xf32>
    %271 = arith.mulf %249, %249 : vector<8x128xf32>
    %272 = arith.mulf %258, %258 : vector<8x128xf32>
    %273 = arith.addf %271, %272 : vector<8x128xf32>
    %274 = arith.mulf %261, %261 : vector<8x128xf32>
    %275 = arith.addf %273, %274 : vector<8x128xf32>
    %276 = arith.mulf %264, %264 : vector<8x128xf32>
    %277 = arith.mulf %267, %267 : vector<8x128xf32>
    %278 = arith.addf %276, %277 : vector<8x128xf32>
    %279 = arith.mulf %270, %270 : vector<8x128xf32>
    %280 = arith.addf %278, %279 : vector<8x128xf32>
    %cst_82 = arith.constant 2.000000e+00 : f32
    %281 = vector.broadcast %cst_82 : f32 to vector<8x128xf32>
    %282 = arith.mulf %281, %280 : vector<8x128xf32>
    %283 = arith.addf %275, %282 : vector<8x128xf32>
    %284 = arith.addf %245, %283 : vector<8x128xf32>
    %c0_83 = arith.constant 0 : index
    %c0_84 = arith.constant 0 : index
    %c0_85 = arith.constant 0 : index
    %c0_86 = arith.constant 0 : index
    %285 = vector.load %arg4[%c0_83, %c0_84, %c0_85, %c0_86] : memref<1x1x8x128xf32, #tpu.memory_space<vmem>>, vector<1x1x8x128xf32>
    %286 = vector.shape_cast %285 : vector<1x1x8x128xf32> to vector<8x128xf32>
    %287 = arith.subf %286, %247 : vector<8x128xf32>
    %288 = arith.subf %287, %248 : vector<8x128xf32>
    %c7_i32_87 = arith.constant 7 : i32
    %289 = tpu.dynamic_rotate %208 by %c7_i32_87 dim 0 : vector<8x128xf32>, i32 -> vector<8x128xf32>
    %290 = arith.subf %289, %208 : vector<8x128xf32>
    %291 = arith.select %3, %290, %6 : vector<8x128xi1>, vector<8x128xf32>
    %c127_i32_88 = arith.constant 127 : i32
    %292 = tpu.dynamic_rotate %208 by %c127_i32_88 dim 1 : vector<8x128xf32>, i32 -> vector<8x128xf32>
    %293 = arith.subf %292, %208 : vector<8x128xf32>
    %294 = arith.select %5, %293, %6 : vector<8x128xi1>, vector<8x128xf32>
    %c7_i32_89 = arith.constant 7 : i32
    %295 = tpu.dynamic_rotate %291 by %c7_i32_89 dim 0 : vector<8x128xf32>, i32 -> vector<8x128xf32>
    %296 = arith.subf %295, %291 : vector<8x128xf32>
    %297 = arith.select %3, %296, %6 : vector<8x128xi1>, vector<8x128xf32>
    %c127_i32_90 = arith.constant 127 : i32
    %298 = tpu.dynamic_rotate %294 by %c127_i32_90 dim 1 : vector<8x128xf32>, i32 -> vector<8x128xf32>
    %299 = arith.subf %298, %294 : vector<8x128xf32>
    %300 = arith.select %5, %299, %6 : vector<8x128xi1>, vector<8x128xf32>
    %c127_i32_91 = arith.constant 127 : i32
    %301 = tpu.dynamic_rotate %291 by %c127_i32_91 dim 1 : vector<8x128xf32>, i32 -> vector<8x128xf32>
    %302 = arith.subf %301, %291 : vector<8x128xf32>
    %303 = arith.select %5, %302, %6 : vector<8x128xi1>, vector<8x128xf32>
    %c7_i32_92 = arith.constant 7 : i32
    %304 = tpu.dynamic_rotate %248 by %c7_i32_92 dim 0 : vector<8x128xf32>, i32 -> vector<8x128xf32>
    %305 = arith.subf %304, %248 : vector<8x128xf32>
    %306 = arith.select %3, %305, %6 : vector<8x128xi1>, vector<8x128xf32>
    %c127_i32_93 = arith.constant 127 : i32
    %307 = tpu.dynamic_rotate %248 by %c127_i32_93 dim 1 : vector<8x128xf32>, i32 -> vector<8x128xf32>
    %308 = arith.subf %307, %248 : vector<8x128xf32>
    %309 = arith.select %5, %308, %6 : vector<8x128xi1>, vector<8x128xf32>
    %310 = arith.mulf %288, %288 : vector<8x128xf32>
    %311 = arith.mulf %297, %297 : vector<8x128xf32>
    %312 = arith.addf %310, %311 : vector<8x128xf32>
    %313 = arith.mulf %300, %300 : vector<8x128xf32>
    %314 = arith.addf %312, %313 : vector<8x128xf32>
    %315 = arith.mulf %303, %303 : vector<8x128xf32>
    %316 = arith.mulf %306, %306 : vector<8x128xf32>
    %317 = arith.addf %315, %316 : vector<8x128xf32>
    %318 = arith.mulf %309, %309 : vector<8x128xf32>
    %319 = arith.addf %317, %318 : vector<8x128xf32>
    %cst_94 = arith.constant 2.000000e+00 : f32
    %320 = vector.broadcast %cst_94 : f32 to vector<8x128xf32>
    %321 = arith.mulf %320, %319 : vector<8x128xf32>
    %322 = arith.addf %314, %321 : vector<8x128xf32>
    %323 = arith.addf %284, %322 : vector<8x128xf32>
    %c0_i32 = arith.constant 0 : i32
    %324 = arith.cmpi eq, %arg1, %c0_i32 : i32
    %325 = arith.extui %324 : i1 to i32
    %c0_i32_95 = arith.constant 0 : i32
    %326 = arith.cmpi ne, %325, %c0_i32_95 : i32
    scf.if %326 {
      %c0_98 = arith.constant 0 : index
      %c0_99 = arith.constant 0 : index
      %c0_100 = arith.constant 0 : index
      %330 = vector.load %arg5[%c0_98, %c0_99, %c0_100] : memref<1x8x128xf32, #tpu.memory_space<vmem>>, vector<1x8x128xf32>
      %331 = vector.shape_cast %330 : vector<1x8x128xf32> to vector<8x128xf32>
      %332 = vector.shape_cast %323 : vector<8x128xf32> to vector<1x8x128xf32>
      tpu.vector_store %arg5[%c0_98, %c0_99, %c0_100], %332 {strides = array<i32>} : memref<1x8x128xf32, #tpu.memory_space<vmem>>, vector<1x8x128xf32>,
    } else {
    }
    %c0_i32_96 = arith.constant 0 : i32
    %327 = arith.cmpi ne, %arg1, %c0_i32_96 : i32
    %328 = arith.extui %327 : i1 to i32
    %c0_i32_97 = arith.constant 0 : i32
    %329 = arith.cmpi ne, %328, %c0_i32_97 : i32
    scf.if %329 {
      %c0_98 = arith.constant 0 : index
      %c0_99 = arith.constant 0 : index
      %c0_100 = arith.constant 0 : index
      %330 = vector.load %arg5[%c0_98, %c0_99, %c0_100] : memref<1x8x128xf32, #tpu.memory_space<vmem>>, vector<1x8x128xf32>
      %331 = vector.shape_cast %330 : vector<1x8x128xf32> to vector<8x128xf32>
      %332 = arith.addf %331, %323 : vector<8x128xf32>
      %c0_101 = arith.constant 0 : index
      %c0_102 = arith.constant 0 : index
      %c0_103 = arith.constant 0 : index
      %333 = vector.load %arg5[%c0_101, %c0_102, %c0_103] : memref<1x8x128xf32, #tpu.memory_space<vmem>>, vector<1x8x128xf32>
      %334 = vector.shape_cast %333 : vector<1x8x128xf32> to vector<8x128xf32>
      %335 = vector.shape_cast %332 : vector<8x128xf32> to vector<1x8x128xf32>
      tpu.vector_store %arg5[%c0_101, %c0_102, %c0_103], %335 {strides = array<i32>} : memref<1x8x128xf32, #tpu.memory_space<vmem>>, vector<1x8x128xf32>,
    } else {
    }
    return
  }
  func.func @transform_0(%arg0: i32, %arg1: i32) -> (i32, i32, i32, i32) {
    %c0_i32 = arith.constant 0 : i32
    %c0_i32_0 = arith.constant 0 : i32
    %c0_i32_1 = arith.constant 0 : i32
    return %arg0, %arg1, %c0_i32, %c0_i32_0 : i32, i32, i32, i32
  }
  func.func @transform_1(%arg0: i32, %arg1: i32) -> (i32, i32, i32, i32) {
    %c1_i32 = arith.constant 1 : i32
    %0 = arith.addi %arg1, %c1_i32 : i32
    %c8_i32 = arith.constant 8 : i32
    %1 = arith.muli %0, %c8_i32 : i32
    %c0_i32 = arith.constant 0 : i32
    %2 = arith.addi %1, %c0_i32 : i32
    %c7_i32 = arith.constant 7 : i32
    %3 = arith.minsi %2, %c7_i32 : i32
    %c0_i32_0 = arith.constant 0 : i32
    %c0_i32_1 = arith.constant 0 : i32
    %c0_i32_2 = arith.constant 0 : i32
    return %arg0, %3, %c0_i32_0, %c0_i32_1 : i32, i32, i32, i32
  }
  func.func @transform_2(%arg0: i32, %arg1: i32) -> (i32, i32, i32, i32) {
    %c1_i32 = arith.constant 1 : i32
    %0 = arith.addi %arg1, %c1_i32 : i32
    %c8_i32 = arith.constant 8 : i32
    %1 = arith.muli %0, %c8_i32 : i32
    %c1_i32_0 = arith.constant 1 : i32
    %2 = arith.addi %1, %c1_i32_0 : i32
    %c7_i32 = arith.constant 7 : i32
    %3 = arith.minsi %2, %c7_i32 : i32
    %c0_i32 = arith.constant 0 : i32
    %c0_i32_1 = arith.constant 0 : i32
    %c0_i32_2 = arith.constant 0 : i32
    return %arg0, %3, %c0_i32, %c0_i32_1 : i32, i32, i32, i32
  }
  func.func @transform_3(%arg0: i32, %arg1: i32) -> (i32, i32, i32) {
    %c0_i32 = arith.constant 0 : i32
    %c0_i32_0 = arith.constant 0 : i32
    %c0_i32_1 = arith.constant 0 : i32
    return %arg0, %c0_i32, %c0_i32_0 : i32, i32, i32
  }
}

</mosaic_0001>

<llo_original>
// kernel: tpu_custom_call.1
$region0: #{tpu_custom_call.1}
  #allocation0 [shape = 'u32[]', space=smem, size = 0x4, offset = 0x4, fixed_abs, tag = 'smem constant byte address 0x4 - core index']
  #allocation1 [shape = 'u32[144,128]{1,0:T(1,128)}', space=vmem, size = 0x12000, scoped, tag = 'internal scratch']
  %s0 = inlined_call_operand.hbm [shape: f32[6,8,8,128], index: 0, kind: input, shape index: {}]
  %s1 = inlined_call_operand.hbm [shape: f32[6,8,8,128], index: 1, kind: input, shape index: {}]
  %s2 = inlined_call_operand.hbm [shape: f32[6,8,8,128], index: 2, kind: input, shape index: {}]
  %s3 = inlined_call_operand.hbm [shape: f32[6,8,128], index: 3, kind: output, shape index: {}]
  %s4 = sld [smem:[#allocation0]]
  $region65: #{tpu_custom_call.1} parent=0
    _
  %s6 = ssub.s32 1, %s4
  %s7 = scalar_select 0, %s6, %s4
  $region1: #{tpu_custom_call.1} parent=0
    #allocation2 [shape = 'u8[65536]{0}', space=vmem, size = 0x10000, scoped, tag = 'input window, operand 0']
    #allocation3 [shape = 's32[2]{0}', space=sflag, size = 0x8, scoped, tag = 'scoped memory for tpu_custom_call.1']
    #allocation4 [shape = 's32[2]{0}', space=sflag, size = 0x8, scoped, tag = 'scoped memory for tpu_custom_call.1']
    #allocation5 [shape = 'u8[8192]{0}', space=vmem, size = 0x2000, scoped, tag = 'input window, operand 1']
    #allocation6 [shape = 's32[2]{0}', space=sflag, size = 0x8, scoped, tag = 'scoped memory for tpu_custom_call.1']
    #allocation7 [shape = 'u8[8192]{0}', space=vmem, size = 0x2000, scoped, tag = 'input window, operand 2']
    #allocation8 [shape = 'u8[8192]{0}', space=vmem, size = 0x2000, scoped, tag = 'output window, operand 0']
    %8 = vsyncpa [#allocation3], 0
    %s9 = scalar_lea.sflag [#allocation3], 1
    %10 = vsyncpa %s9, 0
    %11 = vsyncpa [#allocation6], 0
    %s12 = scalar_lea.sflag [#allocation6], 1
    %13 = vsyncpa %s12, 0
    %14 = vsyncpa [#allocation4], 0
    %s15 = scalar_lea.sflag [#allocation4], 1
    %16 = vsyncpa %s15, 0
    loop: start=0, step=1, limit=8
    $region2: #{tpu_custom_call.1} parent=1 // loop_pre_header
      _
    $region3: #{tpu_custom_call.1} parent=1 // loop_header
      %s18 = sphi 0, %s22
      %p19 = scmp.ge.s32.totalorder %s18, 8
      %s25 = sphi 0, %s37
      %s26 = sphi 0, %s33
      %s27 = sphi 0, %s25
      %s28 = sphi 0, %s26
      %s29 = sphi 0, %s27
      %s30 = sphi 0, %s28
      %s42 = sphi 0, %s44
      %s45 = sphi 0, %s42
      %s46 = sphi 0, %s45
      %s62 = sphi 0, %s46
      %s78 = sphi 0, %s80
      %s81 = sphi 0, %s78
      %s82 = sphi 0, %s81
      %s98 = sphi 0, %s82
      %s116 = sphi 0, %s118
      %s119 = sphi 0, %s116
      %s120 = sphi 0, %s119
      %s136 = sphi 0, %s120
      %s142 = sphi 0, %s144
      %s145 = sphi 0, %s142
      %s146 = sphi 0, %s145
      %s162 = sphi 0, %s146
    $region4: #{tpu_custom_call.1} parent=1 // loop_header_branch
      %21 = sbr.rel (%p19) target = $region8
    $region5: #{tpu_custom_call.1} parent=1 // loop_body
      %s23 = ssub.s32 %s18, 1
      %s24 = ssub.s32 %s18, 2
      %s31 = sadd.s32 1, %s26
      %p32 = scmp.ge.s32.totalorder %s31, 1
      %s33 = scalar_select %p32, 0, %s31
      %s34 = sadd.s32 1, %s25
      %s35 = scalar_select %p32, %s34, %s25
      %p36 = scmp.ge.s32.totalorder %s35, 6
      %s37 = scalar_select %p36, 0, %s35
      %s38 = ssub.s32 %s25, %s37
      %s39 = ssub.s32 %s26, %s33
      %s40 = sor.u32 %s38, %s39
      %p41 = scmp.eq.s32.totalorder %s40, 0
      %s43 = sadd.s32 %s42, 1
      %s44 = scalar_select %p41, %s42, %s43
      %p47 = pneg %p41
      %p48 = scmp.eq.s32.totalorder %s18, 5
      %p49 = por %p47, %p48
      %p50 = scmp.ne.s32.totalorder %s42, %s45
      %p51 = scmp.eq.s32.totalorder %s18, 0
      %p52 = por %p50, %p51
      %p53 = scmp.ne.s32.totalorder %s42, %s45
      %p54 = scmp.eq.s32.totalorder %s23, 5
      %p55 = por %p53, %p54
      %p56 = scmp.ne.s32.totalorder %s45, %s46
      %p57 = scmp.eq.s32.totalorder %s23, 0
      %p58 = por %p56, %p57
      %p59 = scmp.ne.s32.totalorder %s45, %s46
      %p60 = scmp.eq.s32.totalorder %s24, 5
      %p61 = por %p59, %p60
      %p63 = scmp.ne.s32.totalorder %s46, %s62
      %p64 = scmp.eq.s32.totalorder %s24, 0
      %p65 = por %p63, %p64
      %s66 = sadd.s32 %s26, 1
      %s67 = smul.u32 %s66, 8
      %p68 = scmp.lt.s32.totalorder %s67, 7
      %s69 = scalar_select %p68, %s67, 7
      %s70 = sadd.s32 %s33, 1
      %s71 = smul.u32 %s70, 8
      %p72 = scmp.lt.s32.totalorder %s71, 7
      %s73 = scalar_select %p72, %s71, 7
      %s74 = ssub.s32 %s25, %s37
      %s75 = ssub.s32 %s69, %s73
      %s76 = sor.u32 %s74, %s75
      %p77 = scmp.eq.s32.totalorder %s76, 0
      %s79 = sadd.s32 %s78, 1
      %s80 = scalar_select %p77, %s78, %s79
      %p83 = pneg %p77
      %p84 = scmp.eq.s32.totalorder %s18, 5
      %p85 = por %p83, %p84
      %p86 = scmp.ne.s32.totalorder %s78, %s81
      %p87 = scmp.eq.s32.totalorder %s18, 0
      %p88 = por %p86, %p87
      %p89 = scmp.ne.s32.totalorder %s78, %s81
      %p90 = scmp.eq.s32.totalorder %s23, 5
      %p91 = por %p89, %p90
      %p92 = scmp.ne.s32.totalorder %s81, %s82
      %p93 = scmp.eq.s32.totalorder %s23, 0
      %p94 = por %p92, %p93
      %p95 = scmp.ne.s32.totalorder %s81, %s82
      %p96 = scmp.eq.s32.totalorder %s24, 5
      %p97 = por %p95, %p96
      %p99 = scmp.ne.s32.totalorder %s82, %s98
      %p100 = scmp.eq.s32.totalorder %s24, 0
      %p101 = por %p99, %p100
      %s102 = sadd.s32 %s26, 1
      %s103 = smul.u32 %s102, 8
      %s104 = sadd.s32 %s103, 1
      %p105 = scmp.lt.s32.totalorder %s104, 7
      %s106 = scalar_select %p105, %s104, 7
      %s107 = sadd.s32 %s33, 1
      %s108 = smul.u32 %s107, 8
      %s109 = sadd.s32 %s108, 1
      %p110 = scmp.lt.s32.totalorder %s109, 7
      %s111 = scalar_select %p110, %s109, 7
      %s112 = ssub.s32 %s25, %s37
      %s113 = ssub.s32 %s106, %s111
      %s114 = sor.u32 %s112, %s113
      %p115 = scmp.eq.s32.totalorder %s114, 0
      %s117 = sadd.s32 %s116, 1
      %s118 = scalar_select %p115, %s116, %s117
      %p121 = pneg %p115
      %p122 = scmp.eq.s32.totalorder %s18, 5
      %p123 = por %p121, %p122
      %p124 = scmp.ne.s32.totalorder %s116, %s119
      %p125 = scmp.eq.s32.totalorder %s18, 0
      %p126 = por %p124, %p125
      %p127 = scmp.ne.s32.totalorder %s116, %s119
      %p128 = scmp.eq.s32.totalorder %s23, 5
      %p129 = por %p127, %p128
      %p130 = scmp.ne.s32.totalorder %s119, %s120
      %p131 = scmp.eq.s32.totalorder %s23, 0
      %p132 = por %p130, %p131
      %p133 = scmp.ne.s32.totalorder %s119, %s120
      %p134 = scmp.eq.s32.totalorder %s24, 5
      %p135 = por %p133, %p134
      %p137 = scmp.ne.s32.totalorder %s120, %s136
      %p138 = scmp.eq.s32.totalorder %s24, 0
      %p139 = por %p137, %p138
      %s140 = ssub.s32 %s25, %s37
      %p141 = scmp.eq.s32.totalorder %s140, 0
      %s143 = sadd.s32 %s142, 1
      %s144 = scalar_select %p141, %s142, %s143
      %p147 = pneg %p141
      %p148 = scmp.eq.s32.totalorder %s18, 5
      %p149 = por %p147, %p148
      %p150 = scmp.ne.s32.totalorder %s142, %s145
      %p151 = scmp.eq.s32.totalorder %s18, 0
      %p152 = por %p150, %p151
      %p153 = scmp.ne.s32.totalorder %s142, %s145
      %p154 = scmp.eq.s32.totalorder %s23, 5
      %p155 = por %p153, %p154
      %p156 = scmp.ne.s32.totalorder %s145, %s146
      %p157 = scmp.eq.s32.totalorder %s23, 0
      %p158 = por %p156, %p157
      %p159 = scmp.ne.s32.totalorder %s145, %s146
      %p160 = scmp.eq.s32.totalorder %s24, 5
      %p161 = por %p159, %p160
      %p163 = scmp.ne.s32.totalorder %s146, %s162
      %p164 = scmp.eq.s32.totalorder %s24, 0
      %p165 = por %p163, %p164
      %p166 = scmp.le.s32.totalorder 1, %s18
      %p167 = scmp.lt.s32.totalorder %s18, 7
      %p168 = pnand %p166, %p167
      %p169 = pneg %p168
      // Predicated region
      $region9: #{tpu_custom_call.1} parent=5 // pred_check
        _
      $region10: #{tpu_custom_call.1} parent=5 // pred_check_branch
        %171 = sbr.rel (%p168) target = $region12
      $region11: #{tpu_custom_call.1} parent=5 // pred_region
        %s172 = ssub.s32 %s18, 1
      $region12: #{tpu_custom_call.1} parent=5 // pred_fallthru
        _
      %p173 = scmp.lt.s32.totalorder %s18, 6
      // Predicated region
      $region13: #{tpu_custom_call.1} parent=5 // pred_check
        %p174 = pneg %p173
      $region14: #{tpu_custom_call.1} parent=5 // pred_check_branch
        %176 = sbr.rel (%p174) target = $region16
      $region15: #{tpu_custom_call.1} parent=5 // pred_region
        // Predicated region
        $region17: #{tpu_custom_call.1} parent=15 // pred_check
          %p177 = pneg %p52
        $region18: #{tpu_custom_call.1} parent=15 // pred_check_branch
          %179 = sbr.rel (%p177) target = $region20
        $region19: #{tpu_custom_call.1} parent=15 // pred_region
          %s180 = sand.u32 %s42, 1
          %s181 = scalar_lea.sflag [#allocation3], %s180
          %s182 = sand.u32 %s42, 1
          %s183 = smul.addr %s182, 64
          %s184 = scalar_lea.vmem [#allocation2], %s183
          %s185 = smul.u32 8, %s26
          %s187 = ssub.s32 1024, 1024
          %188 = vsyncadd %s181, %s187
          %s189 = smul.addr %s25, 8
          %s190 = sadd.s32 %s185, %s189
          %s191 = smul.addr %s190, 128
          %s192 = scalar_lea.hbm %s0, %s191
          %s193 = sshll.u32 %s184, 4
          %s194 = int_to_ptr.vmem [resolvable:$true] %s193
          %199 = dma.hbm_to_vmem [thread:$0]  %s192, 1024, %s194, %s181, 128, 128, 8
        $region20: #{tpu_custom_call.1} parent=15 // pred_fallthru
          _
        // Predicated region
        $region21: #{tpu_custom_call.1} parent=15 // pred_check
          %p200 = pneg %p88
        $region22: #{tpu_custom_call.1} parent=15 // pred_check_branch
          %202 = sbr.rel (%p200) target = $region24
        $region23: #{tpu_custom_call.1} parent=15 // pred_region
          %s203 = sand.u32 %s18, 1
          %s204 = scalar_lea.sflag [#allocation6], %s203
          %s205 = sand.u32 %s78, 1
          %s206 = smul.addr %s205, 8
          %s207 = scalar_lea.vmem [#allocation5], %s206
          %s208 = sadd.s32 %s26, 1
          %s209 = smul.u32 %s208, 8
          %p210 = scmp.lt.s32.totalorder %s209, 7
          %s211 = scalar_select %p210, %s209, 7
          %s213 = ssub.s32 128, 128
          %214 = vsyncadd %s204, %s213
          %s215 = smul.addr %s25, 8
          %s216 = sadd.s32 %s211, %s215
          %s217 = smul.addr %s216, 128
          %s218 = scalar_lea.hbm %s1, %s217
          %s220 = sshll.u32 %s207, 4
          %s221 = int_to_ptr.vmem [resolvable:$true] %s220
          %223 = dma.hbm_to_vmem [thread:$0]  %s218, 128, %s221, %s204
        $region24: #{tpu_custom_call.1} parent=15 // pred_fallthru
          _
        // Predicated region
        $region25: #{tpu_custom_call.1} parent=15 // pred_check
          %p224 = pneg %p126
        $region26: #{tpu_custom_call.1} parent=15 // pred_check_branch
          %226 = sbr.rel (%p224) target = $region28
        $region27: #{tpu_custom_call.1} parent=15 // pred_region
          %s227 = sand.u32 %s18, 1
          %s228 = scalar_lea.sflag [#allocation6], %s227
          %s229 = sand.u32 %s116, 1
          %s230 = smul.addr %s229, 8
          %s231 = scalar_lea.vmem [#allocation7], %s230
          %s232 = sadd.s32 %s26, 1
          %s233 = smul.u32 %s232, 8
          %s234 = sadd.s32 %s233, 1
          %p235 = scmp.lt.s32.totalorder %s234, 7
          %s236 = scalar_select %p235, %s234, 7
          %s238 = ssub.s32 128, 128
          %239 = vsyncadd %s228, %s238
          %s240 = smul.addr %s25, 8
          %s241 = sadd.s32 %s236, %s240
          %s242 = smul.addr %s241, 128
          %s243 = scalar_lea.hbm %s2, %s242
          %s245 = sshll.u32 %s231, 4
          %s246 = int_to_ptr.vmem [resolvable:$true] %s245
          %248 = dma.hbm_to_vmem [thread:$0]  %s243, 128, %s246, %s228
        $region28: #{tpu_custom_call.1} parent=15 // pred_fallthru
          _
      $region16: #{tpu_custom_call.1} parent=5 // pred_fallthru
        _
      %p249 = scmp.le.s32.totalorder 1, %s18
      %p250 = scmp.lt.s32.totalorder %s18, 7
      %p251 = pnand %p249, %p250
      %p252 = pneg %p251
      // Predicated region
      $region29: #{tpu_custom_call.1} parent=5 // pred_check
        _
      $region30: #{tpu_custom_call.1} parent=5 // pred_check_branch
        %254 = sbr.rel (%p251) target = $region32
      $region31: #{tpu_custom_call.1} parent=5 // pred_region
        %s255 = ssub.s32 %s18, 1
        %s256 = sand.u32 %s45, 1
        %s257 = scalar_lea.sflag [#allocation3], %s256
        %s258 = sand.u32 %s45, 1
        %s259 = smul.addr %s258, 64
        %s260 = scalar_lea.vmem [#allocation2], %s259
        // Predicated region
        $region33: #{tpu_custom_call.1} parent=31 // pred_check
          %p261 = pneg %p58
        $region34: #{tpu_custom_call.1} parent=31 // pred_check_branch
          %263 = sbr.rel (%p261) target = $region36
        $region35: #{tpu_custom_call.1} parent=31 // pred_region
          %264 = dma.done %s257, 1024
        $region36: #{tpu_custom_call.1} parent=31 // pred_fallthru
          _
        %s265 = sand.u32 %s23, 1
        %s266 = scalar_lea.sflag [#allocation6], %s265
        %s267 = sand.u32 %s81, 1
        %s268 = smul.addr %s267, 8
        %s269 = scalar_lea.vmem [#allocation5], %s268
        // Predicated region
        $region37: #{tpu_custom_call.1} parent=31 // pred_check
          %p270 = pneg %p94
        $region38: #{tpu_custom_call.1} parent=31 // pred_check_branch
          %272 = sbr.rel (%p270) target = $region40
        $region39: #{tpu_custom_call.1} parent=31 // pred_region
          %273 = dma.done %s266, 128
        $region40: #{tpu_custom_call.1} parent=31 // pred_fallthru
          _
        %s274 = sand.u32 %s23, 1
        %s275 = scalar_lea.sflag [#allocation6], %s274
        %s276 = sand.u32 %s119, 1
        %s277 = smul.addr %s276, 8
        %s278 = scalar_lea.vmem [#allocation7], %s277
        // Predicated region
        $region41: #{tpu_custom_call.1} parent=31 // pred_check
          %p279 = pneg %p132
        $region42: #{tpu_custom_call.1} parent=31 // pred_check_branch
          %281 = sbr.rel (%p279) target = $region44
        $region43: #{tpu_custom_call.1} parent=31 // pred_region
          %282 = dma.done %s275, 128
        $region44: #{tpu_custom_call.1} parent=31 // pred_fallthru
          _
        %s283 = sand.u32 %s45, 1
        %s284 = scalar_lea.sflag [#allocation3], %s283
        %s285 = sand.u32 %s45, 1
        %s286 = smul.addr %s285, 64
        %s287 = scalar_lea.vmem [#allocation2], %s286
        %p288 = pneg %p58
        %p289 = pneg %p55
        %s290 = sand.u32 %s23, 1
        %s291 = scalar_lea.sflag [#allocation6], %s290
        %s292 = sand.u32 %s81, 1
        %s293 = smul.addr %s292, 8
        %s294 = scalar_lea.vmem [#allocation5], %s293
        %p295 = pneg %p94
        %p296 = pneg %p91
        %s297 = sand.u32 %s23, 1
        %s298 = scalar_lea.sflag [#allocation6], %s297
        %s299 = sand.u32 %s119, 1
        %s300 = smul.addr %s299, 8
        %s301 = scalar_lea.vmem [#allocation7], %s300
        %p302 = pneg %p132
        %p303 = pneg %p129
        %p304 = pneg %p158
        %p305 = pneg %p155
        %s306 = sand.u32 %s145, 1
        %s307 = scalar_lea.sflag [#allocation4], %s306
        %s308 = sand.u32 %s145, 1
        %s309 = smul.addr %s308, 8
        %s310 = scalar_lea.vmem [#allocation8], %s309
        %s311 = smul.u32 8, %s28
        %s312 = sadd.s32 %s28, 1
        %s313 = smul.u32 %s312, 8
        %p314 = scmp.lt.s32.totalorder %s313, 7
        %s315 = scalar_select %p314, %s313, 7
        %s316 = sadd.s32 %s28, 1
        %s317 = smul.u32 %s316, 8
        %s318 = sadd.s32 %s317, 1
        %p319 = scmp.lt.s32.totalorder %s318, 7
        %s320 = scalar_select %p319, %s318, 7
        %v321 = vlaneseq
        %v322 = vshrl.u32 %v321, 7
        %v323 = vlaneseq
        %v324 = vand.u32 %v323, 127
        %vm325 = vcmp.lt.s32.totalorder %v322, 7
        %vm326 = vcmp.lt.s32.totalorder %v324, 15
        %v327 = vld [vmem:[%s260] sm:$0xff]
        %s328 = scalar_lea.vmem %s260, 8 [#allocation2]
        %v329 = vld [vmem:[%s328] sm:$0xff]
        %v330 = vsub.f32 %v329, %v327
        %s331 = scalar_lea.vmem %s260, 16 [#allocation2]
        %v332 = vld [vmem:[%s331] sm:$0xff]
        %v333 = vsub.f32 %v332, %v329
        %v334 = vsub.f32 %v333, %v330
        %v335 = vrot.slane %v327, 1
        %v336 = vsub.f32 %v335, %v327
        %v337 = vsel %vm325, %v336, 0.0
        %338 = vrot.lane.b32.xlu0 %v327, 127
        %v339 = vpop.permute.xlu0 %338
        %v340 = vsub.f32 %v339, %v327
        %v341 = vsel %vm326, %v340, 0.0
        %v342 = vrot.slane %v337, 1
        %v343 = vsub.f32 %v342, %v337
        %v344 = vsel %vm325, %v343, 0.0
        %345 = vrot.lane.b32.xlu0 %v341, 127
        %v346 = vpop.permute.xlu0 %345
        %v347 = vsub.f32 %v346, %v341
        %v348 = vsel %vm326, %v347, 0.0
        %349 = vrot.lane.b32.xlu0 %v337, 127
        %v350 = vpop.permute.xlu0 %349
        %v351 = vsub.f32 %v350, %v337
        %v352 = vsel %vm326, %v351, 0.0
        %v353 = vrot.slane %v330, 1
        %v354 = vsub.f32 %v353, %v330
        %v355 = vsel %vm325, %v354, 0.0
        %356 = vrot.lane.b32.xlu0 %v330, 127
        %v357 = vpop.permute.xlu0 %356
        %v358 = vsub.f32 %v357, %v330
        %v359 = vsel %vm326, %v358, 0.0
        %v360 = vmul.f32 %v334, %v334
        %v361 = vmul.f32 %v344, %v344
        %v362 = vadd.f32 %v360, %v361
        %v363 = vmul.f32 %v348, %v348
        %v364 = vadd.f32 %v362, %v363
        %v365 = vmul.f32 %v352, %v352
        %v366 = vmul.f32 %v355, %v355
        %v367 = vadd.f32 %v365, %v366
        %v368 = vmul.f32 %v359, %v359
        %v369 = vadd.f32 %v367, %v368
        %v370 = vmul.f32 %v369, 2.0
        %v371 = vadd.f32 %v364, %v370
        %v372 = vadd.f32 %v371, 0.0
        %s373 = scalar_lea.vmem %s260, 24 [#allocation2]
        %v374 = vld [vmem:[%s373] sm:$0xff]
        %v375 = vsub.f32 %v374, %v332
        %v376 = vsub.f32 %v375, %v333
        %v377 = vrot.slane %v329, 1
        %v378 = vsub.f32 %v377, %v329
        %v379 = vsel %vm325, %v378, 0.0
        %380 = vrot.lane.b32.xlu0 %v329, 127
        %v381 = vpop.permute.xlu0 %380
        %v382 = vsub.f32 %v381, %v329
        %v383 = vsel %vm326, %v382, 0.0
        %v384 = vrot.slane %v379, 1
        %v385 = vsub.f32 %v384, %v379
        %v386 = vsel %vm325, %v385, 0.0
        %387 = vrot.lane.b32.xlu0 %v383, 127
        %v388 = vpop.permute.xlu0 %387
        %v389 = vsub.f32 %v388, %v383
        %v390 = vsel %vm326, %v389, 0.0
        %391 = vrot.lane.b32.xlu0 %v379, 127
        %v392 = vpop.permute.xlu0 %391
        %v393 = vsub.f32 %v392, %v379
        %v394 = vsel %vm326, %v393, 0.0
        %v395 = vrot.slane %v333, 1
        %v396 = vsub.f32 %v395, %v333
        %v397 = vsel %vm325, %v396, 0.0
        %398 = vrot.lane.b32.xlu0 %v333, 127
        %v399 = vpop.permute.xlu0 %398
        %v400 = vsub.f32 %v399, %v333
        %v401 = vsel %vm326, %v400, 0.0
        %v402 = vmul.f32 %v376, %v376
        %v403 = vmul.f32 %v386, %v386
        %v404 = vadd.f32 %v402, %v403
        %v405 = vmul.f32 %v390, %v390
        %v406 = vadd.f32 %v404, %v405
        %v407 = vmul.f32 %v394, %v394
        %v408 = vmul.f32 %v397, %v397
        %v409 = vadd.f32 %v407, %v408
        %v410 = vmul.f32 %v401, %v401
        %v411 = vadd.f32 %v409, %v410
        %v412 = vmul.f32 %v411, 2.0
        %v413 = vadd.f32 %v406, %v412
        %v414 = vadd.f32 %v372, %v413
        %s415 = scalar_lea.vmem %s260, 32 [#allocation2]
        %v416 = vld [vmem:[%s415] sm:$0xff]
        %v417 = vsub.f32 %v416, %v374
        %v418 = vsub.f32 %v417, %v375
        %v419 = vrot.slane %v332, 1
        %v420 = vsub.f32 %v419, %v332
        %v421 = vsel %vm325, %v420, 0.0
        %422 = vrot.lane.b32.xlu0 %v332, 127
        %v423 = vpop.permute.xlu0 %422
        %v424 = vsub.f32 %v423, %v332
        %v425 = vsel %vm326, %v424, 0.0
        %v426 = vrot.slane %v421, 1
        %v427 = vsub.f32 %v426, %v421
        %v428 = vsel %vm325, %v427, 0.0
        %429 = vrot.lane.b32.xlu0 %v425, 127
        %v430 = vpop.permute.xlu0 %429
        %v431 = vsub.f32 %v430, %v425
        %v432 = vsel %vm326, %v431, 0.0
        %433 = vrot.lane.b32.xlu0 %v421, 127
        %v434 = vpop.permute.xlu0 %433
        %v435 = vsub.f32 %v434, %v421
        %v436 = vsel %vm326, %v435, 0.0
        %v437 = vrot.slane %v375, 1
        %v438 = vsub.f32 %v437, %v375
        %v439 = vsel %vm325, %v438, 0.0
        %440 = vrot.lane.b32.xlu0 %v375, 127
        %v441 = vpop.permute.xlu0 %440
        %v442 = vsub.f32 %v441, %v375
        %v443 = vsel %vm326, %v442, 0.0
        %v444 = vmul.f32 %v418, %v418
        %v445 = vmul.f32 %v428, %v428
        %v446 = vadd.f32 %v444, %v445
        %v447 = vmul.f32 %v432, %v432
        %v448 = vadd.f32 %v446, %v447
        %v449 = vmul.f32 %v436, %v436
        %v450 = vmul.f32 %v439, %v439
        %v451 = vadd.f32 %v449, %v450
        %v452 = vmul.f32 %v443, %v443
        %v453 = vadd.f32 %v451, %v452
        %v454 = vmul.f32 %v453, 2.0
        %v455 = vadd.f32 %v448, %v454
        %v456 = vadd.f32 %v414, %v455
        %s457 = scalar_lea.vmem %s260, 40 [#allocation2]
        %v458 = vld [vmem:[%s457] sm:$0xff]
        %v459 = vsub.f32 %v458, %v416
        %v460 = vsub.f32 %v459, %v417
        %v461 = vrot.slane %v374, 1
        %v462 = vsub.f32 %v461, %v374
        %v463 = vsel %vm325, %v462, 0.0
        %464 = vrot.lane.b32.xlu0 %v374, 127
        %v465 = vpop.permute.xlu0 %464
        %v466 = vsub.f32 %v465, %v374
        %v467 = vsel %vm326, %v466, 0.0
        %v468 = vrot.slane %v463, 1
        %v469 = vsub.f32 %v468, %v463
        %v470 = vsel %vm325, %v469, 0.0
        %471 = vrot.lane.b32.xlu0 %v467, 127
        %v472 = vpop.permute.xlu0 %471
        %v473 = vsub.f32 %v472, %v467
        %v474 = vsel %vm326, %v473, 0.0
        %475 = vrot.lane.b32.xlu0 %v463, 127
        %v476 = vpop.permute.xlu0 %475
        %v477 = vsub.f32 %v476, %v463
        %v478 = vsel %vm326, %v477, 0.0
        %v479 = vrot.slane %v417, 1
        %v480 = vsub.f32 %v479, %v417
        %v481 = vsel %vm325, %v480, 0.0
        %482 = vrot.lane.b32.xlu0 %v417, 127
        %v483 = vpop.permute.xlu0 %482
        %v484 = vsub.f32 %v483, %v417
        %v485 = vsel %vm326, %v484, 0.0
        %v486 = vmul.f32 %v460, %v460
        %v487 = vmul.f32 %v470, %v470
        %v488 = vadd.f32 %v486, %v487
        %v489 = vmul.f32 %v474, %v474
        %v490 = vadd.f32 %v488, %v489
        %v491 = vmul.f32 %v478, %v478
        %v492 = vmul.f32 %v481, %v481
        %v493 = vadd.f32 %v491, %v492
        %v494 = vmul.f32 %v485, %v485
        %v495 = vadd.f32 %v493, %v494
        %v496 = vmul.f32 %v495, 2.0
        %v497 = vadd.f32 %v490, %v496
        %v498 = vadd.f32 %v456, %v497
        %s499 = scalar_lea.vmem %s260, 48 [#allocation2]
        %v500 = vld [vmem:[%s499] sm:$0xff]
        %v501 = vsub.f32 %v500, %v458
        %v502 = vsub.f32 %v501, %v459
        %v503 = vrot.slane %v416, 1
        %v504 = vsub.f32 %v503, %v416
        %v505 = vsel %vm325, %v504, 0.0
        %506 = vrot.lane.b32.xlu0 %v416, 127
        %v507 = vpop.permute.xlu0 %506
        %v508 = vsub.f32 %v507, %v416
        %v509 = vsel %vm326, %v508, 0.0
        %v510 = vrot.slane %v505, 1
        %v511 = vsub.f32 %v510, %v505
        %v512 = vsel %vm325, %v511, 0.0
        %513 = vrot.lane.b32.xlu0 %v509, 127
        %v514 = vpop.permute.xlu0 %513
        %v515 = vsub.f32 %v514, %v509
        %v516 = vsel %vm326, %v515, 0.0
        %517 = vrot.lane.b32.xlu0 %v505, 127
        %v518 = vpop.permute.xlu0 %517
        %v519 = vsub.f32 %v518, %v505
        %v520 = vsel %vm326, %v519, 0.0
        %v521 = vrot.slane %v459, 1
        %v522 = vsub.f32 %v521, %v459
        %v523 = vsel %vm325, %v522, 0.0
        %524 = vrot.lane.b32.xlu0 %v459, 127
        %v525 = vpop.permute.xlu0 %524
        %v526 = vsub.f32 %v525, %v459
        %v527 = vsel %vm326, %v526, 0.0
        %v528 = vmul.f32 %v502, %v502
        %v529 = vmul.f32 %v512, %v512
        %v530 = vadd.f32 %v528, %v529
        %v531 = vmul.f32 %v516, %v516
        %v532 = vadd.f32 %v530, %v531
        %v533 = vmul.f32 %v520, %v520
        %v534 = vmul.f32 %v523, %v523
        %v535 = vadd.f32 %v533, %v534
        %v536 = vmul.f32 %v527, %v527
        %v537 = vadd.f32 %v535, %v536
        %v538 = vmul.f32 %v537, 2.0
        %v539 = vadd.f32 %v532, %v538
        %v540 = vadd.f32 %v498, %v539
        %s541 = scalar_lea.vmem %s260, 56 [#allocation2]
        %v542 = vld [vmem:[%s541] sm:$0xff]
        %v543 = vsub.f32 %v542, %v500
        %v544 = vsub.f32 %v543, %v501
        %v545 = vrot.slane %v458, 1
        %v546 = vsub.f32 %v545, %v458
        %v547 = vsel %vm325, %v546, 0.0
        %548 = vrot.lane.b32.xlu0 %v458, 127
        %v549 = vpop.permute.xlu0 %548
        %v550 = vsub.f32 %v549, %v458
        %v551 = vsel %vm326, %v550, 0.0
        %v552 = vrot.slane %v547, 1
        %v553 = vsub.f32 %v552, %v547
        %v554 = vsel %vm325, %v553, 0.0
        %555 = vrot.lane.b32.xlu0 %v551, 127
        %v556 = vpop.permute.xlu0 %555
        %v557 = vsub.f32 %v556, %v551
        %v558 = vsel %vm326, %v557, 0.0
        %559 = vrot.lane.b32.xlu0 %v547, 127
        %v560 = vpop.permute.xlu0 %559
        %v561 = vsub.f32 %v560, %v547
        %v562 = vsel %vm326, %v561, 0.0
        %v563 = vrot.slane %v501, 1
        %v564 = vsub.f32 %v563, %v501
        %v565 = vsel %vm325, %v564, 0.0
        %566 = vrot.lane.b32.xlu0 %v501, 127
        %v567 = vpop.permute.xlu0 %566
        %v568 = vsub.f32 %v567, %v501
        %v569 = vsel %vm326, %v568, 0.0
        %v570 = vmul.f32 %v544, %v544
        %v571 = vmul.f32 %v554, %v554
        %v572 = vadd.f32 %v570, %v571
        %v573 = vmul.f32 %v558, %v558
        %v574 = vadd.f32 %v572, %v573
        %v575 = vmul.f32 %v562, %v562
        %v576 = vmul.f32 %v565, %v565
        %v577 = vadd.f32 %v575, %v576
        %v578 = vmul.f32 %v569, %v569
        %v579 = vadd.f32 %v577, %v578
        %v580 = vmul.f32 %v579, 2.0
        %v581 = vadd.f32 %v574, %v580
        %v582 = vadd.f32 %v540, %v581
        %v583 = vld [vmem:[%s269] sm:$0xff]
        %v584 = vsub.f32 %v583, %v542
        %v585 = vsub.f32 %v584, %v543
        %v586 = vrot.slane %v500, 1
        %v587 = vsub.f32 %v586, %v500
        %v588 = vsel %vm325, %v587, 0.0
        %589 = vrot.lane.b32.xlu0 %v500, 127
        %v590 = vpop.permute.xlu0 %589
        %v591 = vsub.f32 %v590, %v500
        %v592 = vsel %vm326, %v591, 0.0
        %v593 = vrot.slane %v588, 1
        %v594 = vsub.f32 %v593, %v588
        %v595 = vsel %vm325, %v594, 0.0
        %596 = vrot.lane.b32.xlu0 %v592, 127
        %v597 = vpop.permute.xlu0 %596
        %v598 = vsub.f32 %v597, %v592
        %v599 = vsel %vm326, %v598, 0.0
        %600 = vrot.lane.b32.xlu0 %v588, 127
        %v601 = vpop.permute.xlu0 %600
        %v602 = vsub.f32 %v601, %v588
        %v603 = vsel %vm326, %v602, 0.0
        %v604 = vrot.slane %v543, 1
        %v605 = vsub.f32 %v604, %v543
        %v606 = vsel %vm325, %v605, 0.0
        %607 = vrot.lane.b32.xlu0 %v543, 127
        %v608 = vpop.permute.xlu0 %607
        %v609 = vsub.f32 %v608, %v543
        %v610 = vsel %vm326, %v609, 0.0
        %v611 = vmul.f32 %v585, %v585
        %v612 = vmul.f32 %v595, %v595
        %v613 = vadd.f32 %v611, %v612
        %v614 = vmul.f32 %v599, %v599
        %v615 = vadd.f32 %v613, %v614
        %v616 = vmul.f32 %v603, %v603
        %v617 = vmul.f32 %v606, %v606
        %v618 = vadd.f32 %v616, %v617
        %v619 = vmul.f32 %v610, %v610
        %v620 = vadd.f32 %v618, %v619
        %v621 = vmul.f32 %v620, 2.0
        %v622 = vadd.f32 %v615, %v621
        %v623 = vadd.f32 %v582, %v622
        %v624 = vld [vmem:[%s278] sm:$0xff]
        %v625 = vsub.f32 %v624, %v583
        %v626 = vsub.f32 %v625, %v584
        %v627 = vrot.slane %v542, 1
        %v628 = vsub.f32 %v627, %v542
        %v629 = vsel %vm325, %v628, 0.0
        %630 = vrot.lane.b32.xlu0 %v542, 127
        %v631 = vpop.permute.xlu0 %630
        %v632 = vsub.f32 %v631, %v542
        %v633 = vsel %vm326, %v632, 0.0
        %v634 = vrot.slane %v629, 1
        %v635 = vsub.f32 %v634, %v629
        %v636 = vsel %vm325, %v635, 0.0
        %637 = vrot.lane.b32.xlu0 %v633, 127
        %v638 = vpop.permute.xlu0 %637
        %v639 = vsub.f32 %v638, %v633
        %v640 = vsel %vm326, %v639, 0.0
        %641 = vrot.lane.b32.xlu0 %v629, 127
        %v642 = vpop.permute.xlu0 %641
        %v643 = vsub.f32 %v642, %v629
        %v644 = vsel %vm326, %v643, 0.0
        %v645 = vrot.slane %v584, 1
        %v646 = vsub.f32 %v645, %v584
        %v647 = vsel %vm325, %v646, 0.0
        %648 = vrot.lane.b32.xlu0 %v584, 127
        %v649 = vpop.permute.xlu0 %648
        %v650 = vsub.f32 %v649, %v584
        %v651 = vsel %vm326, %v650, 0.0
        %v652 = vmul.f32 %v626, %v626
        %v653 = vmul.f32 %v636, %v636
        %v654 = vadd.f32 %v652, %v653
        %v655 = vmul.f32 %v640, %v640
        %v656 = vadd.f32 %v654, %v655
        %v657 = vmul.f32 %v644, %v644
        %v658 = vmul.f32 %v647, %v647
        %v659 = vadd.f32 %v657, %v658
        %v660 = vmul.f32 %v651, %v651
        %v661 = vadd.f32 %v659, %v660
        %v662 = vmul.f32 %v661, 2.0
        %v663 = vadd.f32 %v656, %v662
        %v664 = vadd.f32 %v623, %v663
        %p665 = scmp.eq.s32.totalorder %s28, 0
        // Predicated region
        $region45: #{tpu_custom_call.1} parent=31 // pred_check
          %p666 = pneg %p665
        $region46: #{tpu_custom_call.1} parent=31 // pred_check_branch
          %668 = sbr.rel (%p666) target = $region48
        $region47: #{tpu_custom_call.1} parent=31 // pred_region
          %669 = vst [vmem:[%s310] sm:$0xff] %v664
        $region48: #{tpu_custom_call.1} parent=31 // pred_fallthru
          _
        %p670 = scmp.ne.s32.totalorder %s28, 0
        // Predicated region
        $region49: #{tpu_custom_call.1} parent=31 // pred_check
          %p671 = pneg %p670
        $region50: #{tpu_custom_call.1} parent=31 // pred_check_branch
          %673 = sbr.rel (%p671) target = $region52
        $region51: #{tpu_custom_call.1} parent=31 // pred_region
          %v674 = vld [vmem:[%s310] sm:$0xff]
          %v675 = vadd.f32 %v674, %v664
          %676 = vst [vmem:[%s310] sm:$0xff] %v675
        $region52: #{tpu_custom_call.1} parent=31 // pred_fallthru
          _
        %s677 = sand.u32 %s145, 1
        %s678 = scalar_lea.sflag [#allocation4], %s677
        %s679 = sand.u32 %s145, 1
        %s680 = smul.addr %s679, 8
        %s681 = scalar_lea.vmem [#allocation8], %s680
        // Predicated region
        $region53: #{tpu_custom_call.1} parent=31 // pred_check
          %p682 = pneg %p155
        $region54: #{tpu_custom_call.1} parent=31 // pred_check_branch
          %684 = sbr.rel (%p682) target = $region56
        $region55: #{tpu_custom_call.1} parent=31 // pred_region
          %s686 = ssub.s32 128, 128
          %687 = vsyncadd %s678, %s686
          %s688 = smul.addr %s27, 128
          %s689 = scalar_lea.hbm %s3, %s688
          %s691 = sshll.u32 %s681, 4
          %s692 = int_to_ptr.vmem [resolvable:$true] %s691
          %694 = dma.vmem_to_hbm [thread:$0]  %s692, 128, %s689, %s678
        $region56: #{tpu_custom_call.1} parent=31 // pred_fallthru
          _
      $region32: #{tpu_custom_call.1} parent=5 // pred_fallthru
        _
      %p695 = scmp.le.s32.totalorder 2, %s18
      // Predicated region
      $region57: #{tpu_custom_call.1} parent=5 // pred_check
        %p696 = pneg %p695
      $region58: #{tpu_custom_call.1} parent=5 // pred_check_branch
        %698 = sbr.rel (%p696) target = $region60
      $region59: #{tpu_custom_call.1} parent=5 // pred_region
        %s699 = ssub.s32 %s18, 2
        // Predicated region
        $region61: #{tpu_custom_call.1} parent=59 // pred_check
          %p700 = pneg %p161
        $region62: #{tpu_custom_call.1} parent=59 // pred_check_branch
          %702 = sbr.rel (%p700) target = $region64
        $region63: #{tpu_custom_call.1} parent=59 // pred_region
          %s703 = sand.u32 %s146, 1
          %s704 = scalar_lea.sflag [#allocation4], %s703
          %s705 = sand.u32 %s146, 1
          %s706 = smul.addr %s705, 8
          %s707 = scalar_lea.vmem [#allocation8], %s706
          %708 = dma.done %s704, 128
        $region64: #{tpu_custom_call.1} parent=59 // pred_fallthru
          _
      $region60: #{tpu_custom_call.1} parent=5 // pred_fallthru
        _
    $region6: #{tpu_custom_call.1} parent=1 // loop_footer
      %s22 = sadd.s32 1, %s18
    $region7: #{tpu_custom_call.1} parent=1 // loop_footer_branch
      %17 = sbr.rel target = $region3
    $region8: #{tpu_custom_call.1} parent=1 // loop_exit
      _
    %709 = vsyncpa [#allocation3], 1
    %s710 = scalar_lea.sflag [#allocation3], 1
    %711 = vsyncpa %s710, 1
    %712 = vsyncpa [#allocation6], 1
    %s713 = scalar_lea.sflag [#allocation6], 1
    %714 = vsyncpa %s713, 1
    %715 = vsyncpa [#allocation4], 1
    %s716 = scalar_lea.sflag [#allocation4], 1
    %717 = vsyncpa %s716, 1

</llo_original>
